<compile_context>
chip_gen: v5e
topology: v5e:2x2
jax: 0.10.0
libtpu: 0.0.40
codegen_flags: <defaults>
</compile_context>

<pallas_src>
import functools
import math

import jax
import jax.numpy as jnp
from jax.experimental import pallas as pl
from jax.experimental.pallas import tpu as pltpu

EPS = 1e-6
P_INIT = 3.0

_TM_MAX = 256                 # max rows per tile (streaming path)
_TL_MAX = 8192                # max reduction elements per tile
_TILE_BYTE_BUDGET = 4 << 20   # ~4 MiB per pipeline input buffer
_SMALL_L = 128                # below this, use the lane-dense transposed kernel
_VMEM_LIMIT = 32 << 20        # scoped-VMEM request; <= physical on v5e/v6e/v7x


def _round_up(a: int, b: int) -> int:
    return ((a + b - 1) // b) * b


def _round_down(a: int, b: int) -> int:
    return (a // b) * b


def _pow_p(x_f32, p, use_bf16_eup):
    """x ** p for x > 0 via exp(p*log(x)); optional bf16 EUP for the exp."""
    lx = p * jnp.log(x_f32)
    if use_bf16_eup:
        return jnp.exp(lx.astype(jnp.bfloat16)).astype(jnp.float32)
    return jnp.exp(lx)


# ---------------------------------------------------------------------------
# Streaming kernel: x laid out (B*C, L), grid = (row tiles, L tiles).
# ---------------------------------------------------------------------------
def _make_row_kernel(true_L: int, n_pad_cols: int, eps: float, use_bf16_eup: bool):
    inv_L = 1.0 / float(true_L)
    log_eps = float(math.log(eps))

    def kernel(p_ref, x_ref, o_ref, acc_ref):
        # p_ref  : SMEM (1,)      learnable exponent p
        # x_ref  : VMEM (TM, TL)  input tile
        # o_ref  : VMEM (TM, 1)   output tile (resident across k)
        # acc_ref: VMEM (TM, 1)   f32 running sum of x**p
        k = pl.program_id(1)

        @pl.when(k == 0)
        def _init():
            acc_ref[...] = jnp.zeros_like(acc_ref)

        p = p_ref[0]
        x = jnp.maximum(x_ref[...].astype(jnp.float32), eps)   # clamp(min=eps)
        xp = _pow_p(x, p, use_bf16_eup)                        # x ** p
        acc_ref[...] += jnp.sum(xp, axis=-1, keepdims=True)    # no per-step mask

        @pl.when(k == pl.num_programs(1) - 1)
        def _finalize():
            acc = acc_ref[...]
            if n_pad_cols:
                # Exact correction for zero-padded (-> eps-clamped) columns,
                # using the runtime p.
                acc = acc - n_pad_cols * jnp.exp(p * log_eps)
            mean = acc * inv_L                                  # divide by TRUE L
            o_ref[...] = jnp.exp(jnp.log(mean) * (1.0 / p)).astype(o_ref.dtype)

    return kernel


# ---------------------------------------------------------------------------
# Small-L kernel: x transposed to (L, B*C) so B*C is lane-dense.
# ---------------------------------------------------------------------------
def _make_lane_kernel(true_L: int, n_pad_rows: int, eps: float, use_bf16_eup: bool):
    inv_L = 1.0 / float(true_L)
    log_eps = float(math.log(eps))

    def kernel(p_ref, x_ref, o_ref):
        # p_ref: SMEM (1,);  x_ref: VMEM (L_pad, TN);  o_ref: VMEM (1, TN)
        p = p_ref[0]
        x = jnp.maximum(x_ref[...].astype(jnp.float32), eps)
        xp = _pow_p(x, p, use_bf16_eup)
        s = jnp.sum(xp, axis=0, keepdims=True)                  # sublane reduce
        if n_pad_rows:
            s = s - n_pad_rows * jnp.exp(p * log_eps)
        mean = s * inv_L
        o_ref[...] = jnp.exp(jnp.log(mean) * (1.0 / p)).astype(o_ref.dtype)

    return kernel


# ---------------------------------------------------------------------------
# Wrappers
# ---------------------------------------------------------------------------
def _gem_pool_stream(x, p, eps, use_bf16_eup, B, C, L, BC, itemsize):
    x2 = x.reshape(BC, L)

    # Row tile: aim for >= 2 blocks (v7x megacore) up to _TM_MAX rows.
    if BC <= 2 * _TM_MAX:
        TM = min(_TM_MAX, max(8, _round_up(-(-BC // 2), 8)))
    else:
        TM = _TM_MAX
    BC_pad = _round_up(BC, TM)

    # Reduction tile: byte budget, multiple of 128.
    tl_cap = max(128, min(_TL_MAX,
                          _round_down(_TILE_BYTE_BUDGET // (TM * itemsize), 128)))
    TL = min(_round_up(L, 128), tl_cap)
    L_pad = _round_up(L, TL)
    n_pad_cols = L_pad - L

    if BC_pad != BC or L_pad != L:
        # Zero pad: padded rows are sliced off; padded columns clamp to eps and
        # their exact contribution is removed in the kernel finalize.
        x2 = jnp.pad(x2, ((0, BC_pad - BC), (0, L_pad - L)), constant_values=0.0)

    grid = (BC_pad // TM, L_pad // TL)
    kernel = _make_row_kernel(L, n_pad_cols, eps, use_bf16_eup)

    cost = pl.CostEstimate(
        flops=int(3 * BC_pad * L_pad),
        transcendentals=int(2 * BC_pad * L_pad + 3 * BC_pad),
        bytes_accessed=int(BC_pad * L_pad * itemsize + BC_pad * itemsize),
    )

    out = pl.pallas_call(
        kernel,
        out_shape=jax.ShapeDtypeStruct((BC_pad, 1), x.dtype),
        grid=grid,
        in_specs=[
            pl.BlockSpec(memory_space=pltpu.MemorySpace.SMEM),      # p (scalar)
            pl.BlockSpec((TM, TL), lambda i, k: (i, k)),            # x tile
        ],
        out_specs=pl.BlockSpec((TM, 1), lambda i, k: (i, 0)),       # resident over k
        scratch_shapes=[pltpu.VMEM((TM, 1), jnp.float32)],          # f32 running sum
        compiler_params=pltpu.CompilerParams(
            dimension_semantics=("parallel", "arbitrary"),
            vmem_limit_bytes=_VMEM_LIMIT),
        cost_estimate=cost,
    )(p, x2)

    return out[:BC].reshape(B, C, 1)


def _gem_pool_small_l(x, p, eps, use_bf16_eup, B, C, L, BC, itemsize):
    # Transpose so B*C sits on the 128-lane axis; tiny L goes on sublanes.
    xt = x.reshape(BC, L).T                                         # (L, BC)
    L_pad = max(8, _round_up(L, 8))
    n_pad_rows = L_pad - L

    tn_cap = max(128, min(1 << 16,
                          _round_down(_TILE_BYTE_BUDGET // (L_pad * itemsize), 128)))
    if _round_up(BC, 128) <= 2 * tn_cap:
        TN = min(tn_cap, max(128, _round_up(-(-BC // 2), 128)))     # >=2 blocks when possible
    else:
        TN = tn_cap
    BC_pad = _round_up(BC, TN)

    if L_pad != L or BC_pad != BC:
        xt = jnp.pad(xt, ((0, L_pad - L), (0, BC_pad - BC)), constant_values=0.0)

    grid = (BC_pad // TN,)
    kernel = _make_lane_kernel(L, n_pad_rows, eps, use_bf16_eup)

    cost = pl.CostEstimate(
        flops=int(3 * L_pad * BC_pad),
        transcendentals=int(2 * L_pad * BC_pad + 3 * BC_pad),
        bytes_accessed=int(L_pad * BC_pad * itemsize + BC_pad * itemsize),
    )

    out = pl.pallas_call(
        kernel,
        out_shape=jax.ShapeDtypeStruct((1, BC_pad), x.dtype),
        grid=grid,
        in_specs=[
            pl.BlockSpec(memory_space=pltpu.MemorySpace.SMEM),      # p (scalar)
            pl.BlockSpec((L_pad, TN), lambda j: (0, j)),            # x tile (L on sublanes)
        ],
        out_specs=pl.BlockSpec((1, TN), lambda j: (0, j)),          # lane-dense output
        compiler_params=pltpu.CompilerParams(
            dimension_semantics=("parallel",),
            vmem_limit_bytes=_VMEM_LIMIT),
        cost_estimate=cost,
    )(p, xt)

    return out[0, :BC].reshape(B, C, 1)


@functools.partial(jax.jit, static_argnames=("eps", "use_bf16_eup"))
def gem_pool(x: jax.Array, p: jax.Array, eps: float = EPS,
             use_bf16_eup: bool = False) -> jax.Array:
    """x: (B, C, L); p: (1,) learnable exponent.  Returns (B, C, 1) in x.dtype."""
    B, C, L = x.shape
    BC = B * C
    itemsize = jnp.dtype(x.dtype).itemsize
    p = p.astype(jnp.float32)
    if L < _SMALL_L:
        return _gem_pool_small_l(x, p, eps, use_bf16_eup, B, C, L, BC, itemsize)
    return _gem_pool_stream(x, p, eps, use_bf16_eup, B, C, L, BC, itemsize)


def gem_pool_ref(x, p, eps: float = EPS):
    # Pure-JAX reference mirroring the torch forward.
    xf = jnp.maximum(x.astype(jnp.float32), eps)
    m = jnp.mean(xf ** p[0], axis=-1, keepdims=True)
    return (m ** (1.0 / p[0])).astype(x.dtype)


if __name__ == "__main__":
    key = jax.random.PRNGKey(0)
    p = jnp.ones((1,), dtype=jnp.float32) * P_INIT                  # Parameter(ones(1)*p)

    # 1) Small shape matching typical module usage -> lane-dense small-L kernel.
    x1 = jax.random.normal(key, (2, 4, 16), dtype=jnp.float32)
    out1 = jax.block_until_ready(gem_pool(x1, p))
    assert out1.shape == (2, 4, 1), out1.shape
    assert jnp.allclose(out1, gem_pool_ref(x1, p), rtol=1e-4, atol=1e-5)

    # 2) Small-L kernel with L not a multiple of 8 (exercises eps^p tail correction).
    x2 = jax.random.normal(jax.random.PRNGKey(1), (1, 3, 60), dtype=jnp.float32)
    out2 = jax.block_until_ready(gem_pool(x2, p))
    assert out2.shape == (1, 3, 1), out2.shape
    assert jnp.allclose(out2, gem_pool_ref(x2, p), rtol=1e-4, atol=1e-5)

    # 3) Streaming kernel: 2 parallel row tiles + padded-column correction (L=2200).
    x3 = jax.random.normal(jax.random.PRNGKey(2), (2, 160, 2200), dtype=jnp.float32)
    out3 = jax.block_until_ready(gem_pool(x3, p))
    assert out3.shape == (2, 160, 1), out3.shape
    assert jnp.allclose(out3, gem_pool_ref(x3, p), rtol=1e-4, atol=1e-5)

    # 4) bf16 activations through the same kernel (halves HBM traffic; f32 accumulate).
    x4 = x3.astype(jnp.bfloat16)
    out4 = jax.block_until_ready(gem_pool(x4, p))
    assert out4.shape == (2, 160, 1), out4.shape
    assert jnp.allclose(out4.astype(jnp.float32),
                        gem_pool_ref(x4, p).astype(jnp.float32),
                        rtol=2e-2, atol=2e-2)

    print("KERNEL_OK")
</pallas_src>

<mosaic_0001>
module attributes {stable_mosaic.version = 11 : i64} {
  func.func @kernel(%arg0: i32, %arg1: memref<1xf32, #tpu.memory_space<smem>>, %arg2: memref<16x128xf32, #tpu.memory_space<vmem>>, %arg3: memref<1x128xf32, #tpu.memory_space<vmem>>) attributes {dimension_semantics = [#tpu.dimension_semantics<parallel>], iteration_bounds = array<i64: 1>, scalar_prefetch = 0 : i64, scratch_operands = 0 : i64, tpu.core_type = #tpu.core_type<tc>, window_params = [{transform_indices = @transform_0, window_bounds = array<i64: 1>}, {transform_indices = @transform_1, window_bounds = array<i64: 16, 128>}, {transform_indices = @transform_2, window_bounds = array<i64: 1, 128>}]} {
    %c0 = arith.constant 0 : index
    %0 = memref.load %arg1[%c0] : memref<1xf32, #tpu.memory_space<smem>>
    %c0_0 = arith.constant 0 : index
    %c0_1 = arith.constant 0 : index
    %1 = vector.load %arg2[%c0_0, %c0_1] : memref<16x128xf32, #tpu.memory_space<vmem>>, vector<16x128xf32>
    %cst = arith.constant 9.99999997E-7 : f32
    %2 = vector.broadcast %cst : f32 to vector<16x128xf32>
    %3 = arith.maximumf %1, %2 : vector<16x128xf32>
    %4 = math.log %3 : vector<16x128xf32>
    %5 = vector.broadcast %0 : f32 to vector<16x128xf32>
    %6 = arith.mulf %5, %4 : vector<16x128xf32>
    %7 = math.exp %6 : vector<16x128xf32>
    %cst_2 = arith.constant dense<0.000000e+00> : vector<128xf32>
    %8 = vector.multi_reduction <add>, %7, %cst_2 [0] : vector<16x128xf32> to vector<128xf32>
    %9 = vector.shape_cast %8 : vector<128xf32> to vector<1x128xf32>
    %cst_3 = arith.constant 6.250000e-02 : f32
    %10 = vector.broadcast %cst_3 : f32 to vector<1x128xf32>
    %11 = arith.mulf %9, %10 : vector<1x128xf32>
    %12 = math.log %11 : vector<1x128xf32>
    %cst_4 = arith.constant 1.000000e+00 : f32
    %13 = arith.divf %cst_4, %0 : f32
    %14 = vector.broadcast %13 : f32 to vector<1x128xf32>
    %15 = arith.mulf %12, %14 : vector<1x128xf32>
    %16 = math.exp %15 : vector<1x128xf32>
    %c0_5 = arith.constant 0 : index
    %c0_6 = arith.constant 0 : index
    %17 = vector.load %arg3[%c0_5, %c0_6] : memref<1x128xf32, #tpu.memory_space<vmem>>, vector<1x128xf32>
    tpu.vector_store %arg3[%c0_5, %c0_6], %16 {strides = array<i32>} : memref<1x128xf32, #tpu.memory_space<vmem>>, vector<1x128xf32>,
    return
  }
  func.func @transform_0(%arg0: i32) -> i32 {
    %c0_i32 = arith.constant 0 : i32
    %c0_i32_0 = arith.constant 0 : i32
    return %c0_i32 : i32
  }
  func.func @transform_1(%arg0: i32) -> (i32, i32) {
    %c0_i32 = arith.constant 0 : i32
    %c0_i32_0 = arith.constant 0 : i32
    return %c0_i32, %arg0 : i32, i32
  }
  func.func @transform_2(%arg0: i32) -> (i32, i32) {
    %c0_i32 = arith.constant 0 : i32
    %c0_i32_0 = arith.constant 0 : i32
    return %c0_i32, %arg0 : i32, i32
  }
}

</mosaic_0001>

<llo_original>
// kernel: squeeze.1
$region0: #{squeeze.1}
  %s0 = inlined_call_operand.vmem [shape: f32[8], index: 0, kind: input, shape index: {}]
  %s1 = inlined_call_operand.hbm [shape: f32[2,4,1], index: 1, kind: output, shape index: {}]
  $region1: #{squeeze.1} parent=0
    #allocation0 [shape = 'u8[1024]{0}', space=vmem, size = 0x400, scoped, tag = 'operand span for operand 1']
    #allocation1 [shape = 's32[1]{0}', space=sflag, size = 0x4, scoped, tag = 'scoped memory for squeeze.1']
    #allocation2 [shape = 'u8[4096]{0}', space=vmem, size = 0x1000, scoped, tag = 'scoped mem for output reshape']
    #allocation3 [shape = 'u8[4096]{0}', space=vmem, size = 0x1000, scoped, tag = 'scoped mem for input reshape']
    %2 = vsyncpa [#allocation1], 0
    %s4 = ssub.s32 2, 1
    %v5 = vld [vmem:[%s0] sm:%s4]
    %6 = vst [vmem:[#allocation3] sm:%s4] %v5
    %v7 = vld [vmem:[#allocation3] sm:$0x1]
    %vm8 = vcmask 31744
    %9 = vst.msk [vmem:[#allocation2] sm:$0x1] %vm8, %v7
    %v10 = vld [vmem:[#allocation3] sm:$0x1]
    %11 = vrot.lane.b32.xlu0 %v10, 124
    %v12 = vpop.permute.xlu0 %11
    %vm13 = vcmask 31744
    %s14 = scalar_lea.vmem [#allocation2], 1
    %15 = vst.msk [vmem:[%s14] sm:$0x1] %vm13, %v12
    %s17 = ssub.s32 4, 1
    %v18 = vld [vmem:[#allocation2] sm:%s17]
    %s20 = ssub.s32 4, 1
    %21 = vst [vmem:[#allocation0] sm:%s20] %v18
    %23 = vsyncadd [#allocation1], 0
    %s25 = sshll.u32 [#allocation0], 4
    %s26 = int_to_ptr.vmem [resolvable:$true] %s25
    %s27 = sshll.u32 %s1, 4
    %s28 = int_to_ptr.hbm [resolvable:$true] %s27
    %30 = dma.vmem_to_hbm [thread:$0]  %s26, 32, %s28, [#allocation1]
    %32 = dma.done [#allocation1], 32
    %33 = vsyncpa [#allocation1], 1

// kernel: gem_pool.1
$region0: #{gem_pool.1}
  #allocation0 [shape = 'u32[]', space=smem, size = 0x4, offset = 0x4, fixed_abs, tag = 'smem constant byte address 0x4 - core index']
  #allocation1 [shape = 'u32[72,128]{1,0:T(1,128)}', space=vmem, size = 0x9000, scoped, tag = 'internal scratch']
  #allocation2 [shape = 'f32[1]{0:T(128)S(6)}', space=smem, size = 0x200, scoped, tag = 'scoped memory for gem_pool.1']
  %s0 = inlined_call_operand.<no memory space> [shape: f32[1], index: 0, kind: input, shape index: {}]
  %s1 = inlined_call_operand.vmem [shape: f32[16,128], index: 1, kind: input, shape index: {}]
  %s2 = inlined_call_operand.vmem [shape: f32[1,128], index: 2, kind: output, shape index: {}]
  %s3 = sld [smem:[#allocation0]]
  $region18: #{gem_pool.1} parent=0
    _
  %s5 = ssub.s32 1, %s3
  %s6 = scalar_select 0, %s5, %s3
  %7 = sst [smem:[#allocation2]] %s0
  // Predicated region
  $region2: #{gem_pool.1} parent=0 // pred_check
    _
  $region3: #{gem_pool.1} parent=0 // pred_check_branch
    %9 = sbr.rel (0) target = $region5
  $region4: #{gem_pool.1} parent=0 // pred_region
    _
  $region5: #{gem_pool.1} parent=0 // pred_fallthru
    _
  // Predicated region
  $region6: #{gem_pool.1} parent=0 // pred_check
    _
  $region7: #{gem_pool.1} parent=0 // pred_check_branch
    %11 = sbr.rel (0) target = $region9
  $region8: #{gem_pool.1} parent=0 // pred_region
    _
  $region9: #{gem_pool.1} parent=0 // pred_fallthru
    _
  %s12 = sld [smem:[#allocation2]]
  %v13 = vld [vmem:[%s1] sm:$0xff]
  %v14 = vld [vmem:[%s1 + $0x8] sm:$0xff]
  %v15 = vmax.f32 %v13, 1e-06
  %v16 = vmax.f32 %v14, 1e-06
  %v17 = vlog2.pop %v15
  %v18 = vmul.f32 %v17, 0.6931472
  %v19 = vlog2.pop %v16
  %v20 = vmul.f32 %v19, 0.6931472
  %v21 = vstv %s12
  %v22 = vmul.f32 %v21, %v18
  %v23 = vmul.f32 %v21, %v20
  %v24 = vmul.f32 %v22, 1.442695
  %v25 = vpow.pop %v24
  %v26 = vmul.f32 %v23, 1.442695
  %v27 = vpow.pop %v26
  %v28 = vadd.f32 %v25, %v27
  %v29 = vrot.slane %v28, 4
  %v30 = vadd.f32 %v28, %v29
  %v31 = vrot.slane %v30, 2
  %v32 = vadd.f32 %v30, %v31
  %v33 = vrot.slane %v32, 1
  %v34 = vadd.f32 %v32, %v33
  %v35 = vmul.f32 %v34, 0.0625
  %v36 = vlog2.pop %v35
  %v37 = vmul.f32 %v36, 0.6931472
  %v38 = vstv %s12
  %v39 = vrcp.pop %v38
  %v40 = vmul.f32 %v38, %v39
  %v41 = vsub.f32 1.0, %v40
  %v42 = vmul.f32 %v39, %v41
  %v43 = vadd.f32 %v39, %v42
  %vm44 = vweird.f32 %v38
  %vm45 = vweird.f32 %v39
  %vm46 = vmor %vm44, %vm45
  %v47 = vsel %vm46, %v39, %v43
  %v48 = vand.u32 2147483647, %v38
  %vm49 = vcmp.eq.f32.partialorder %v48, 8.507059e+37
  %v50 = vand.u32 %v38, 2147483648
  %v51 = vor.u32 1.1754944e-38, %v50
  %v52 = vsel %vm49, %v51, %v47
  %s53 = vtos %v52
  %v54 = vstv %s53
  %v55 = vmul.f32 %v37, %v54
  %v56 = vmul.f32 %v55, 1.442695
  %v57 = vpow.pop %v56
  %58 = vst [vmem:[%s2] sm:$0x1] %v57
  // Predicated region
  $region10: #{gem_pool.1} parent=0 // pred_check
    _
  $region11: #{gem_pool.1} parent=0 // pred_check_branch
    %60 = sbr.rel (0) target = $region13
  $region12: #{gem_pool.1} parent=0 // pred_region
    _
  $region13: #{gem_pool.1} parent=0 // pred_fallthru
    _
  // Predicated region
  $region14: #{gem_pool.1} parent=0 // pred_check
    _
  $region15: #{gem_pool.1} parent=0 // pred_check_branch
    %62 = sbr.rel (0) target = $region17
  $region16: #{gem_pool.1} parent=0 // pred_region
    _
  $region17: #{gem_pool.1} parent=0 // pred_fallthru
    _

</llo_original>
